<compile_context>
chip_gen: v6e
topology: v6e:2x2x1
jax: 0.10.0
libtpu: 0.0.40
codegen_flags: <defaults>
</compile_context>

<pallas_src>
import jax
import jax.numpy as jnp
from jax.experimental import pallas as pl
from jax.experimental.pallas import tpu as pltpu

_LANE = 128
_SUBLANE = 8
# Max rows per batch tile (multiple of 8).  At F=32, Cf=128 the per-tile VMEM
# budget (double-buffered I/O + f32 intermediates) is ~10 MiB -> safe on v5e's
# 16 MiB scoped-VMEM default and trivially on v6e/v7x.
_MAX_BATCH_TILE = 4096
# Below this batch size, splitting into extra grid steps is pure per-step
# overhead (even on v7x the tiles would be too small to matter).
_MIN_SPLIT_BATCH = 1024


def _round_up(x, m):
    return ((x + m - 1) // m) * m


def _fold_and_cut_kernel(x_ref, w1_ref, b1_ref, w2_ref, b2_ref, out_ref):
    w1 = w1_ref[...]
    w2 = w2_ref[...]
    x = x_ref[...].astype(w1.dtype)

    # Layer 1: fused [policy | value] Linear + ReLU.
    # MXU accumulates in f32; bias add and ReLU stay f32 on the VPU.
    h = jnp.dot(x, w1, preferred_element_type=jnp.float32)
    h = jnp.maximum(h + b1_ref[...].astype(jnp.float32), 0.0)

    # Layer 2: block-diagonal Linear -> one lane-dense (bt, Cf) output slab.
    out = jnp.dot(h.astype(w2.dtype), w2, preferred_element_type=jnp.float32)
    out = out + b2_ref[...].astype(jnp.float32)
    out_ref[...] = out.astype(out_ref.dtype)


def pack_params(params, compute_dtype=jnp.float32):
    """One-time XLA-side packing into fused, lane-dense, MXU-aligned weights.

    Hidden and output widths are zero-padded up to multiples of 128 so the
    hidden activation and the output slab are lane-dense (padded hidden
    columns have zero weights AND zero bias -> ReLU(0)=0 -> contribute nothing).
    """
    w1p, w1v = params["w1p"], params["w1v"]
    w2p, w2v = params["w2p"], params["w2v"]
    F, H = w1p.shape
    P = w2p.shape[1]
    V = w2v.shape[1]

    Hf = _round_up(2 * H, _LANE)       # fused + padded hidden width
    Cf = _round_up(P + V, _LANE)       # fused + padded output width

    w1 = jnp.zeros((F, Hf), compute_dtype)
    w1 = w1.at[:, :H].set(w1p.astype(compute_dtype))
    w1 = w1.at[:, H:2 * H].set(w1v.astype(compute_dtype))
    b1 = jnp.zeros((1, Hf), jnp.float32)
    b1 = b1.at[:, :H].set(params["b1p"].astype(jnp.float32))
    b1 = b1.at[:, H:2 * H].set(params["b1v"].astype(jnp.float32))

    w2 = jnp.zeros((Hf, Cf), compute_dtype)        # block-diagonal + zero pad
    w2 = w2.at[:H, :P].set(w2p.astype(compute_dtype))
    w2 = w2.at[H:2 * H, P:P + V].set(w2v.astype(compute_dtype))
    b2 = jnp.zeros((1, Cf), jnp.float32)
    b2 = b2.at[:, :P].set(params["b2p"].astype(jnp.float32))
    b2 = b2.at[:, P:P + V].set(params["b2v"].astype(jnp.float32))
    return w1, b1, w2, b2


def _batch_tile(batch):
    if batch <= _MIN_SPLIT_BATCH:
        # Single full block (block == full dim is exempt from the 8-row rule).
        return min(batch, _MAX_BATCH_TILE)
    # Guarantee >= 2 grid steps so the "parallel" axis can shard across v7x's
    # two TensorCores; tile is a multiple of 8 and capped for the VMEM budget.
    # Ragged last tile is handled by Pallas block clipping (rows independent).
    return min(_MAX_BATCH_TILE, _round_up(pl.cdiv(batch, 2), _SUBLANE))


def fold_and_cut_forward(features, params, *, out_dtype=None, input_buffers=2,
                         return_fused_slab=False):
    """Fused policy+value MLP forward pass as one Pallas kernel.

    features: (B, F).  If bf16 is passed, the MXU operands are bf16 with f32
              accumulation (no wrapper-side cast pass over HBM).
    params:   dict with keys w1p,b1p,w2p,b2p,w1v,b1v,w2v,b2v.
    out_dtype: output dtype (defaults to features.dtype).
    input_buffers: pipeline depth for the activation input (2 = default double
                   buffering; 3 can hide DMA jitter at negligible VMEM cost).
    return_fused_slab: if True, return the padded (B, Cf) slab plus (P, V)
                       instead of two sliced arrays (saves an HBM pass).
    returns: (latent_pi (B, P), latent_vf (B, V))  [or fused slab, see above]
    """
    B, F = features.shape
    H = params["w1p"].shape[1]
    P = params["w2p"].shape[1]
    V = params["w2v"].shape[1]

    # bf16-in -> bf16 MXU operands; otherwise stay f32.  Accumulation is f32
    # either way inside the kernel.
    compute_dtype = jnp.bfloat16 if features.dtype == jnp.bfloat16 else jnp.float32
    if out_dtype is None:
        out_dtype = features.dtype

    w1, b1, w2, b2 = pack_params(params, compute_dtype)
    Hf = w1.shape[1]
    Cf = w2.shape[1]

    bt = _batch_tile(B)
    grid = (pl.cdiv(B, bt),)

    # Explicit VMEM budget (v5e scoped default is only 16 MiB): buffered input
    # tiles + double-buffered output tiles + resident weights + f32
    # intermediates, with 1.5x headroom, clamped to a sane range.
    in_bytes = features.dtype.itemsize
    out_bytes = jnp.dtype(out_dtype).itemsize
    w_bytes = jnp.dtype(compute_dtype).itemsize
    vmem_est = (
        input_buffers * bt * F * in_bytes      # input tiles
        + 2 * bt * Cf * out_bytes              # double-buffered output tiles
        + bt * Hf * 4                          # f32 hidden intermediate
        + bt * Hf * w_bytes                    # hidden cast fed to layer-2 MXU
        + bt * Cf * 4                          # f32 output accumulator
        + (w1.size + w2.size) * w_bytes + (b1.size + b2.size) * 4
    )
    vmem_limit = int(min(max(int(vmem_est * 1.5), 16 * 1024 * 1024),
                         48 * 1024 * 1024))

    # True module FLOPs (block-diagonal zero pad NOT double-counted).
    flops = int(2 * B * F * (2 * H) + 2 * B * H * (P + V))
    bytes_accessed = int(
        B * F * in_bytes + B * Cf * out_bytes
        + (w1.size + w2.size) * w_bytes + (b1.size + b2.size) * 4
    )

    x_spec_kwargs = {}
    if input_buffers != 2:
        x_spec_kwargs["pipeline_mode"] = pl.Buffered(input_buffers)

    in_specs = [
        # batch-tiled activations
        pl.BlockSpec((bt, F), lambda i: (i, 0), **x_spec_kwargs),
        # weights / biases: constant block index -> fetched once, resident
        pl.BlockSpec((F, Hf), lambda i: (0, 0)),
        pl.BlockSpec((1, Hf), lambda i: (0, 0)),
        pl.BlockSpec((Hf, Cf), lambda i: (0, 0)),
        pl.BlockSpec((1, Cf), lambda i: (0, 0)),
    ]
    out_spec = pl.BlockSpec((bt, Cf), lambda i: (i, 0))

    slab = pl.pallas_call(
        _fold_and_cut_kernel,
        out_shape=jax.ShapeDtypeStruct((B, Cf), out_dtype),
        grid_spec=pl.GridSpec(grid=grid, in_specs=in_specs, out_specs=out_spec),
        compiler_params=pltpu.CompilerParams(
            dimension_semantics=("parallel",),
            vmem_limit_bytes=vmem_limit,
        ),
        cost_estimate=pl.CostEstimate(
            flops=flops, transcendentals=0, bytes_accessed=bytes_accessed),
    )(features, w1, b1, w2, b2)

    if return_fused_slab:
        # Lets the consumer index lazily instead of paying an extra HBM pass
        # to materialize two sliced arrays.
        return slab, (P, V)
    return slab[:, :P], slab[:, P:P + V]


def init_params(key, feature_dim, hidden_dim, pi_dim, vf_dim):
    """Deterministic parameter init (uniform, Kaiming-ish scale), f32."""
    ks = jax.random.split(key, 8)

    def lin(kw, kb, fan_in, fan_out):
        bound = 1.0 / jnp.sqrt(jnp.float32(fan_in))
        w = jax.random.uniform(kw, (fan_in, fan_out), jnp.float32, -bound, bound)
        b = jax.random.uniform(kb, (1, fan_out), jnp.float32, -bound, bound)
        return w, b

    w1p, b1p = lin(ks[0], ks[1], feature_dim, hidden_dim)
    w2p, b2p = lin(ks[2], ks[3], hidden_dim, pi_dim)
    w1v, b1v = lin(ks[4], ks[5], feature_dim, hidden_dim)
    w2v, b2v = lin(ks[6], ks[7], hidden_dim, vf_dim)
    return dict(w1p=w1p, b1p=b1p, w2p=w2p, b2p=b2p,
                w1v=w1v, b1v=b1v, w2v=w2v, b2v=b2v)


def reference_forward(features, p):
    h_pi = jnp.maximum(features @ p["w1p"] + p["b1p"], 0.0)
    pi = h_pi @ p["w2p"] + p["b2p"]
    h_vf = jnp.maximum(features @ p["w1v"] + p["b1v"], 0.0)
    vf = h_vf @ p["w2v"] + p["b2v"]
    return pi, vf


if __name__ == "__main__":
    # Small shapes consistent with the module's interface:
    #   batch=8, feature_dim=32, hidden=64, last_layer_dim_pi=32, last_layer_dim_vf=32
    # (At these demo shapes the whole problem is launch-overhead-bound; the
    #  batch-tiled grid/pipelining pays off for real rollout/training batches.)
    B, F, H, P, V = 8, 32, 64, 32, 32

    key = jax.random.PRNGKey(0)
    k_feat, k_params = jax.random.split(key)
    features = jax.random.normal(k_feat, (B, F), jnp.float32)
    params = init_params(k_params, F, H, P, V)

    # Default f32 path: strict check against the pure-JAX reference.
    latent_pi, latent_vf = fold_and_cut_forward(features, params)
    latent_pi = jax.block_until_ready(latent_pi)
    latent_vf = jax.block_until_ready(latent_vf)

    ref_pi, ref_vf = reference_forward(features, params)
    assert latent_pi.shape == (B, P) and latent_vf.shape == (B, V)
    assert jnp.allclose(latent_pi, ref_pi, atol=1e-5, rtol=1e-5)
    assert jnp.allclose(latent_vf, ref_vf, atol=1e-5, rtol=1e-5)

    # bf16-native path (bf16 MXU operands, bf16 I/O, f32 accumulation): just a
    # sanity run — bf16 rounding exceeds the strict f32 tolerance by design.
    pi_bf16, vf_bf16 = fold_and_cut_forward(features.astype(jnp.bfloat16), params)
    pi_bf16 = jax.block_until_ready(pi_bf16)
    vf_bf16 = jax.block_until_ready(vf_bf16)
    assert pi_bf16.shape == (B, P) and vf_bf16.shape == (B, V)
    assert bool(jnp.all(jnp.isfinite(pi_bf16.astype(jnp.float32))))
    assert bool(jnp.all(jnp.isfinite(vf_bf16.astype(jnp.float32))))

    print("KERNEL_OK")
</pallas_src>

<mosaic_0001>
module attributes {stable_mosaic.version = 11 : i64} {
  func.func @_fold_and_cut_kernel(%arg0: i32, %arg1: memref<8x32xf32, #tpu.memory_space<vmem>>, %arg2: memref<32x128xf32, #tpu.memory_space<vmem>>, %arg3: memref<1x128xf32, #tpu.memory_space<vmem>>, %arg4: memref<128x128xf32, #tpu.memory_space<vmem>>, %arg5: memref<1x128xf32, #tpu.memory_space<vmem>>, %arg6: memref<8x128xf32, #tpu.memory_space<vmem>>) attributes {dimension_semantics = [#tpu.dimension_semantics<parallel>], iteration_bounds = array<i64: 1>, scalar_prefetch = 0 : i64, scratch_operands = 0 : i64, tpu.core_type = #tpu.core_type<tc>, window_params = [{transform_indices = @transform_0, window_bounds = array<i64: 8, 32>}, {pipeline_mode = #tpu.pipeline_mode<synchronous>, transform_indices = @transform_1, window_bounds = array<i64: 32, 128>}, {pipeline_mode = #tpu.pipeline_mode<synchronous>, transform_indices = @transform_2, window_bounds = array<i64: 1, 128>}, {pipeline_mode = #tpu.pipeline_mode<synchronous>, transform_indices = @transform_3, window_bounds = array<i64: 128, 128>}, {pipeline_mode = #tpu.pipeline_mode<synchronous>, transform_indices = @transform_4, window_bounds = array<i64: 1, 128>}, {transform_indices = @transform_5, window_bounds = array<i64: 8, 128>}]} {
    %c0 = arith.constant 0 : index
    %c0_0 = arith.constant 0 : index
    %0 = vector.load %arg2[%c0, %c0_0] : memref<32x128xf32, #tpu.memory_space<vmem>>, vector<32x128xf32>
    %c0_1 = arith.constant 0 : index
    %c0_2 = arith.constant 0 : index
    %1 = vector.load %arg4[%c0_1, %c0_2] : memref<128x128xf32, #tpu.memory_space<vmem>>, vector<128x128xf32>
    %c0_3 = arith.constant 0 : index
    %c0_4 = arith.constant 0 : index
    %2 = vector.load %arg1[%c0_3, %c0_4] : memref<8x32xf32, #tpu.memory_space<vmem>>, vector<8x32xf32>
    %cst = arith.constant dense<0.000000e+00> : vector<8x128xf32>
    %3 = tpu.matmul %2, %0, %cst {dimension_numbers = #tpu.dot_dimension_numbers<[1], [0], [0], [1], [0, 0, 1, 1], [], []>} : vector<8x32xf32>, vector<32x128xf32>, vector<8x128xf32> -> vector<8x128xf32>
    %c0_5 = arith.constant 0 : index
    %c0_6 = arith.constant 0 : index
    %4 = vector.load %arg3[%c0_5, %c0_6] : memref<1x128xf32, #tpu.memory_space<vmem>>, vector<1x128xf32>
    %5 = vector.broadcast %4 : vector<1x128xf32> to vector<8x128xf32>
    %6 = arith.addf %3, %5 : vector<8x128xf32>
    %cst_7 = arith.constant 0.000000e+00 : f32
    %7 = vector.broadcast %cst_7 : f32 to vector<8x128xf32>
    %8 = arith.maximumf %6, %7 : vector<8x128xf32>
    %cst_8 = arith.constant dense<0.000000e+00> : vector<8x128xf32>
    %9 = tpu.matmul %8, %1, %cst_8 {dimension_numbers = #tpu.dot_dimension_numbers<[1], [0], [0], [1], [0, 0, 1, 1], [], []>} : vector<8x128xf32>, vector<128x128xf32>, vector<8x128xf32> -> vector<8x128xf32>
    %c0_9 = arith.constant 0 : index
    %c0_10 = arith.constant 0 : index
    %10 = vector.load %arg5[%c0_9, %c0_10] : memref<1x128xf32, #tpu.memory_space<vmem>>, vector<1x128xf32>
    %11 = vector.broadcast %10 : vector<1x128xf32> to vector<8x128xf32>
    %12 = arith.addf %9, %11 : vector<8x128xf32>
    %c0_11 = arith.constant 0 : index
    %c0_12 = arith.constant 0 : index
    %13 = vector.load %arg6[%c0_11, %c0_12] : memref<8x128xf32, #tpu.memory_space<vmem>>, vector<8x128xf32>
    tpu.vector_store %arg6[%c0_11, %c0_12], %12 {strides = array<i32>} : memref<8x128xf32, #tpu.memory_space<vmem>>, vector<8x128xf32>,
    return
  }
  func.func @transform_0(%arg0: i32) -> (i32, i32) {
    %c0_i32 = arith.constant 0 : i32
    %c0_i32_0 = arith.constant 0 : i32
    return %arg0, %c0_i32 : i32, i32
  }
  func.func @transform_1(%arg0: i32) -> (i32, i32) {
    %c0_i32 = arith.constant 0 : i32
    %c0_i32_0 = arith.constant 0 : i32
    %c0_i32_1 = arith.constant 0 : i32
    return %c0_i32, %c0_i32_0 : i32, i32
  }
  func.func @transform_2(%arg0: i32) -> (i32, i32) {
    %c0_i32 = arith.constant 0 : i32
    %c0_i32_0 = arith.constant 0 : i32
    %c0_i32_1 = arith.constant 0 : i32
    return %c0_i32, %c0_i32_0 : i32, i32
  }
  func.func @transform_3(%arg0: i32) -> (i32, i32) {
    %c0_i32 = arith.constant 0 : i32
    %c0_i32_0 = arith.constant 0 : i32
    %c0_i32_1 = arith.constant 0 : i32
    return %c0_i32, %c0_i32_0 : i32, i32
  }
  func.func @transform_4(%arg0: i32) -> (i32, i32) {
    %c0_i32 = arith.constant 0 : i32
    %c0_i32_0 = arith.constant 0 : i32
    %c0_i32_1 = arith.constant 0 : i32
    return %c0_i32, %c0_i32_0 : i32, i32
  }
  func.func @transform_5(%arg0: i32) -> (i32, i32) {
    %c0_i32 = arith.constant 0 : i32
    %c0_i32_0 = arith.constant 0 : i32
    return %arg0, %c0_i32 : i32, i32
  }
}

</mosaic_0001>

<llo_original>
// kernel: tpu_custom_call.1
$region0: #{tpu_custom_call.1}
  #allocation0 [shape = 'u32[]', space=smem, size = 0x4, offset = 0x4, fixed_abs, tag = 'smem constant byte address 0x4 - core index']
  #allocation1 [shape = 'u32[144,128]{1,0:T(1,128)}', space=vmem, size = 0x12000, scoped, tag = 'internal scratch']
  %s0 = inlined_call_operand.hbm [shape: f32[8,32], index: 0, kind: input, shape index: {}]
  %s1 = inlined_call_operand.hbm [shape: f32[32,128], index: 1, kind: input, shape index: {}]
  %s2 = inlined_call_operand.vmem [shape: f32[1,128], index: 2, kind: input, shape index: {}]
  %s3 = inlined_call_operand.hbm [shape: f32[128,128], index: 3, kind: input, shape index: {}]
  %s4 = inlined_call_operand.vmem [shape: f32[1,128], index: 4, kind: input, shape index: {}]
  %s5 = inlined_call_operand.hbm [shape: f32[8,128], index: 5, kind: output, shape index: {}]
  %s6 = sld [smem:[#allocation0]]
  $region42: #{tpu_custom_call.1} parent=0
    _
  %s8 = ssub.s32 1, %s6
  %s9 = scalar_select 0, %s8, %s6
  $region1: #{tpu_custom_call.1} parent=0
    #allocation2 [shape = 'u8[4096]{0}', space=vmem, size = 0x1000, scoped, tag = 'input window, operand 0, single buffered']
    #allocation3 [shape = 's32[1]{0}', space=sflag, size = 0x4, scoped, tag = 'scoped memory for tpu_custom_call.1']
    #allocation4 [shape = 's32[1]{0}', space=sflag, size = 0x4, scoped, tag = 'scoped memory for tpu_custom_call.1']
    #allocation5 [shape = 'u8[16384]{0}', space=vmem, size = 0x4000, scoped, tag = 'input window, operand 1, single buffered']
    #allocation6 [shape = 's32[1]{0}', space=sflag, size = 0x4, scoped, tag = 'scoped memory for tpu_custom_call.1']
    #allocation7 [shape = 'u8[65536]{0}', space=vmem, size = 0x10000, scoped, tag = 'input window, operand 3, single buffered']
    #allocation8 [shape = 'u8[4096]{0}', space=vmem, size = 0x1000, scoped, tag = 'output window, operand 0, single buffered']
    %10 = vsyncpa [#allocation3], 0
    %11 = vsyncpa [#allocation6], 0
    %12 = vsyncpa [#allocation4], 0
    // Predicated region
    $region2: #{tpu_custom_call.1} parent=1 // pred_check
      _
    $region3: #{tpu_custom_call.1} parent=1 // pred_check_branch
      %14 = sbr.rel (0) target = $region5
    $region4: #{tpu_custom_call.1} parent=1 // pred_region
      %s16 = ssub.s32 128, 128
      %17 = vsyncadd [#allocation3], %s16
      %s19 = sshll.u32 [#allocation2], 4
      %s20 = int_to_ptr.vmem [resolvable:$true] %s19
      %22 = dma.hbm_to_vmem [thread:$0]  %s0, 128, %s20, [#allocation3]
    $region5: #{tpu_custom_call.1} parent=1 // pred_fallthru
      _
    // Predicated region
    $region6: #{tpu_custom_call.1} parent=1 // pred_check
      _
    $region7: #{tpu_custom_call.1} parent=1 // pred_check_branch
      %24 = sbr.rel (0) target = $region9
    $region8: #{tpu_custom_call.1} parent=1 // pred_region
      %s26 = ssub.s32 512, 512
      %27 = vsyncadd [#allocation6], %s26
      %s28 = sshll.u32 [#allocation5], 4
      %s29 = int_to_ptr.vmem [resolvable:$true] %s28
      %34 = dma.hbm_to_vmem [thread:$0]  %s1, 512, %s29, [#allocation6], 128, 128, 8
    $region9: #{tpu_custom_call.1} parent=1 // pred_fallthru
      _
    // Predicated region
    $region10: #{tpu_custom_call.1} parent=1 // pred_check
      _
    $region11: #{tpu_custom_call.1} parent=1 // pred_check_branch
      %36 = sbr.rel (0) target = $region13
    $region12: #{tpu_custom_call.1} parent=1 // pred_region
      _
    $region13: #{tpu_custom_call.1} parent=1 // pred_fallthru
      _
    // Predicated region
    $region14: #{tpu_custom_call.1} parent=1 // pred_check
      _
    $region15: #{tpu_custom_call.1} parent=1 // pred_check_branch
      %38 = sbr.rel (0) target = $region17
    $region16: #{tpu_custom_call.1} parent=1 // pred_region
      %s40 = ssub.s32 2048, 2048
      %41 = vsyncadd [#allocation6], %s40
      %s42 = sshll.u32 [#allocation7], 4
      %s43 = int_to_ptr.vmem [resolvable:$true] %s42
      %48 = dma.hbm_to_vmem [thread:$0]  %s3, 2048, %s43, [#allocation6], 128, 128, 8
    $region17: #{tpu_custom_call.1} parent=1 // pred_fallthru
      _
    // Predicated region
    $region18: #{tpu_custom_call.1} parent=1 // pred_check
      _
    $region19: #{tpu_custom_call.1} parent=1 // pred_check_branch
      %50 = sbr.rel (0) target = $region21
    $region20: #{tpu_custom_call.1} parent=1 // pred_region
      _
    $region21: #{tpu_custom_call.1} parent=1 // pred_fallthru
      _
    // Predicated region
    $region22: #{tpu_custom_call.1} parent=1 // pred_check
      _
    $region23: #{tpu_custom_call.1} parent=1 // pred_check_branch
      %52 = sbr.rel (0) target = $region25
    $region24: #{tpu_custom_call.1} parent=1 // pred_region
      %53 = dma.done [#allocation3], 128
    $region25: #{tpu_custom_call.1} parent=1 // pred_fallthru
      _
    // Predicated region
    $region26: #{tpu_custom_call.1} parent=1 // pred_check
      _
    $region27: #{tpu_custom_call.1} parent=1 // pred_check_branch
      %55 = sbr.rel (0) target = $region29
    $region28: #{tpu_custom_call.1} parent=1 // pred_region
      %56 = dma.done [#allocation6], 512
    $region29: #{tpu_custom_call.1} parent=1 // pred_fallthru
      _
    // Predicated region
    $region30: #{tpu_custom_call.1} parent=1 // pred_check
      _
    $region31: #{tpu_custom_call.1} parent=1 // pred_check_branch
      %58 = sbr.rel (0) target = $region33
    $region32: #{tpu_custom_call.1} parent=1 // pred_region
      %59 = dma.done [#allocation6], 2048
    $region33: #{tpu_custom_call.1} parent=1 // pred_fallthru
      _
    %v60 = vld [vmem:[#allocation5] sm:$0xff]
    %v61 = vld [vmem:[#allocation5 + $0x8] sm:$0xff]
    %v62 = vld [vmem:[#allocation5 + $0x10] sm:$0xff]
    %v63 = vld [vmem:[#allocation5 + $0x18] sm:$0xff]
    %v64 = vld [vmem:[#allocation7] sm:$0xff]
    %v65 = vld [vmem:[#allocation7 + $0x8] sm:$0xff]
    %v66 = vld [vmem:[#allocation7 + $0x10] sm:$0xff]
    %v67 = vld [vmem:[#allocation7 + $0x18] sm:$0xff]
    %v68 = vld [vmem:[#allocation7 + $0x20] sm:$0xff]
    %v69 = vld [vmem:[#allocation7 + $0x28] sm:$0xff]
    %v70 = vld [vmem:[#allocation7 + $0x30] sm:$0xff]
    %v71 = vld [vmem:[#allocation7 + $0x38] sm:$0xff]
    %v72 = vld [vmem:[#allocation7 + $0x40] sm:$0xff]
    %v73 = vld [vmem:[#allocation7 + $0x48] sm:$0xff]
    %v74 = vld [vmem:[#allocation7 + $0x50] sm:$0xff]
    %v75 = vld [vmem:[#allocation7 + $0x58] sm:$0xff]
    %v76 = vld [vmem:[#allocation7 + $0x60] sm:$0xff]
    %v77 = vld [vmem:[#allocation7 + $0x68] sm:$0xff]
    %v78 = vld [vmem:[#allocation7 + $0x70] sm:$0xff]
    %v79 = vld [vmem:[#allocation7 + $0x78] sm:$0xff]
    %v80 = vld [vmem:[#allocation2] sm:$0xff]
    %v81 = vld [vmem:[%s2] sm:$0x1]
    %v83 = vlaneseq
    %v84 = vshrl.u32 %v83, 7
    %v85 = vsub.s32 0, %v84
    %v86 = vrot.slane %v81, %v85
    %vm88 = vcmask 261120
    %v90 = vsel %vm88, %v80, 0
    %92 = vmatprep.subr.mxu0 0.0
    %93 = vmatpush1.msra.mxu0 0.0
    %94 = vmatprep.subr.mxu0 0.0
    %95 = vmatpush1.msra.mxu0 0.0
    %96 = vmatprep.subr.mxu0 0.0
    %97 = vmatpush1.msra.mxu0 0.0
    %98 = vmatprep.subr.mxu0 0.0
    %99 = vmatpush1.msra.mxu0 0.0
    %100 = vmatprep.subr.mxu0 0.0
    %101 = vmatpush1.msra.mxu0 0.0
    %102 = vmatprep.subr.mxu0 0.0
    %103 = vmatpush1.msra.mxu0 0.0
    %104 = vmatprep.subr.mxu0 0.0
    %105 = vmatpush1.msra.mxu0 0.0
    %106 = vmatprep.subr.mxu0 0.0
    %107 = vmatpush1.msra.mxu0 0.0
    %108 = vmatprep.subr.mxu0 0.0
    %109 = vmatpush1.msra.mxu0 0.0
    %110 = vmatprep.subr.mxu0 0.0
    %111 = vmatpush1.msra.mxu0 0.0
    %112 = vmatprep.subr.mxu0 0.0
    %113 = vmatpush1.msra.mxu0 0.0
    %114 = vmatprep.subr.mxu0 0.0
    %115 = vmatpush1.msra.mxu0 0.0
    %116 = vmatprep.subr.mxu0 0.0
    %117 = vmatpush1.msra.mxu0 %v63
    %118 = vmatprep.subr.mxu0 0.0
    %119 = vmatpush1.msra.mxu0 %v62
    %120 = vmatprep.subr.mxu0 0.0
    %121 = vmatpush1.msra.mxu0 %v61
    %122 = vmatprep.subr.mxu0 0.0
    %123 = vmatpush1.msra.mxu0 %v60
    %124 = vmatprep.subr.mxu0 0.0
    %125 = vmatpush2.msra.mxu0 0.0
    %126 = vmatprep.subr.mxu0 0.0
    %127 = vmatpush2.msra.mxu0 0.0
    %128 = vmatprep.subr.mxu0 0.0
    %129 = vmatpush2.msra.mxu0 0.0
    %130 = vmatprep.subr.mxu0 0.0
    %131 = vmatpush2.msra.mxu0 0.0
    %132 = vmatprep.subr.mxu0 0.0
    %133 = vmatpush2.msra.mxu0 0.0
    %134 = vmatprep.subr.mxu0 0.0
    %135 = vmatpush2.msra.mxu0 0.0
    %136 = vmatprep.subr.mxu0 0.0
    %137 = vmatpush2.msra.mxu0 0.0
    %138 = vmatprep.subr.mxu0 0.0
    %139 = vmatpush2.msra.mxu0 0.0
    %140 = vmatprep.subr.mxu0 0.0
    %141 = vmatpush2.msra.mxu0 0.0
    %142 = vmatprep.subr.mxu0 0.0
    %143 = vmatpush2.msra.mxu0 0.0
    %144 = vmatprep.subr.mxu0 0.0
    %145 = vmatpush2.msra.mxu0 0.0
    %146 = vmatprep.subr.mxu0 0.0
    %147 = vmatpush2.msra.mxu0 0.0
    %148 = vmatprep.subr.mxu0 0.0
    %149 = vmatpush2.msra.mxu0 0.0
    %150 = vmatprep.subr.mxu0 0.0
    %151 = vmatpush2.msra.mxu0 0.0
    %152 = vmatprep.subr.mxu0 0.0
    %153 = vmatpush2.msra.mxu0 0.0
    %154 = vmatprep.subr.mxu0 0.0
    %155 = vmatpush2.msra.mxu0 0.0
    %156 = vmatprep.mubr.f32.mxu0 0.0
    %157 = vmatmul.mubr.f32.gmra.mxu0 %v90
    %v158 = vpop.f32.mrf.mxu0
    %v159 = vadd.f32 %v86, %v158
    %v160 = vpop.f32.mrf.mxu0
    %161 = vdwg.mxu0
    %v162 = vmax.f32 %v159, 0.0
    %v163 = vld [vmem:[%s4] sm:$0x1]
    %v165 = vlaneseq
    %v166 = vshrl.u32 %v165, 7
    %v167 = vsub.s32 0, %v166
    %v168 = vrot.slane %v163, %v167
    %170 = vmatprep.subr.mxu0 0.0
    %171 = vmatpush1.msra.mxu0 %v79
    %172 = vmatprep.subr.mxu0 0.0
    %173 = vmatpush1.msra.mxu0 %v78
    %174 = vmatprep.subr.mxu0 0.0
    %175 = vmatpush1.msra.mxu0 %v77
    %176 = vmatprep.subr.mxu0 0.0
    %177 = vmatpush1.msra.mxu0 %v76
    %178 = vmatprep.subr.mxu0 0.0
    %179 = vmatpush1.msra.mxu0 %v75
    %180 = vmatprep.subr.mxu0 0.0
    %181 = vmatpush1.msra.mxu0 %v74
    %182 = vmatprep.subr.mxu0 0.0
    %183 = vmatpush1.msra.mxu0 %v73
    %184 = vmatprep.subr.mxu0 0.0
    %185 = vmatpush1.msra.mxu0 %v72
    %186 = vmatprep.subr.mxu0 0.0
    %187 = vmatpush1.msra.mxu0 %v71
    %188 = vmatprep.subr.mxu0 0.0
    %189 = vmatpush1.msra.mxu0 %v70
    %190 = vmatprep.subr.mxu0 0.0
    %191 = vmatpush1.msra.mxu0 %v69
    %192 = vmatprep.subr.mxu0 0.0
    %193 = vmatpush1.msra.mxu0 %v68
    %194 = vmatprep.subr.mxu0 0.0
    %195 = vmatpush1.msra.mxu0 %v67
    %196 = vmatprep.subr.mxu0 0.0
    %197 = vmatpush1.msra.mxu0 %v66
    %198 = vmatprep.subr.mxu0 0.0
    %199 = vmatpush1.msra.mxu0 %v65
    %200 = vmatprep.subr.mxu0 0.0
    %201 = vmatpush1.msra.mxu0 %v64
    %202 = vmatprep.subr.mxu0 0.0
    %203 = vmatpush2.msra.mxu0 0.0
    %204 = vmatprep.subr.mxu0 0.0
    %205 = vmatpush2.msra.mxu0 0.0
    %206 = vmatprep.subr.mxu0 0.0
    %207 = vmatpush2.msra.mxu0 0.0
    %208 = vmatprep.subr.mxu0 0.0
    %209 = vmatpush2.msra.mxu0 0.0
    %210 = vmatprep.subr.mxu0 0.0
    %211 = vmatpush2.msra.mxu0 0.0
    %212 = vmatprep.subr.mxu0 0.0
    %213 = vmatpush2.msra.mxu0 0.0
    %214 = vmatprep.subr.mxu0 0.0
    %215 = vmatpush2.msra.mxu0 0.0
    %216 = vmatprep.subr.mxu0 0.0
    %217 = vmatpush2.msra.mxu0 0.0
    %218 = vmatprep.subr.mxu0 0.0
    %219 = vmatpush2.msra.mxu0 0.0
    %220 = vmatprep.subr.mxu0 0.0
    %221 = vmatpush2.msra.mxu0 0.0
    %222 = vmatprep.subr.mxu0 0.0
    %223 = vmatpush2.msra.mxu0 0.0
    %224 = vmatprep.subr.mxu0 0.0
    %225 = vmatpush2.msra.mxu0 0.0
    %226 = vmatprep.subr.mxu0 0.0
    %227 = vmatpush2.msra.mxu0 0.0
    %228 = vmatprep.subr.mxu0 0.0
    %229 = vmatpush2.msra.mxu0 0.0
    %230 = vmatprep.subr.mxu0 0.0
    %231 = vmatpush2.msra.mxu0 0.0
    %232 = vmatprep.subr.mxu0 0.0
    %233 = vmatpush2.msra.mxu0 0.0
    %234 = vmatprep.mubr.f32.mxu0 0.0
    %235 = vmatmul.mubr.f32.gmra.mxu0 %v162
    %v236 = vpop.f32.mrf.mxu0
    %v237 = vadd.f32 %v168, %v236
    %v238 = vpop.f32.mrf.mxu0
    %239 = vdwg.mxu0
    %240 = vst [vmem:[#allocation8] sm:$0xff] %v237
    // Predicated region
    $region34: #{tpu_custom_call.1} parent=1 // pred_check
      _
    $region35: #{tpu_custom_call.1} parent=1 // pred_check_branch
      %242 = sbr.rel (0) target = $region37
    $region36: #{tpu_custom_call.1} parent=1 // pred_region
      %s244 = ssub.s32 128, 128
      %245 = vsyncadd [#allocation4], %s244
      %s247 = sshll.u32 [#allocation8], 4
      %s248 = int_to_ptr.vmem [resolvable:$true] %s247
      %250 = dma.vmem_to_hbm [thread:$0]  %s248, 128, %s5, [#allocation4]
    $region37: #{tpu_custom_call.1} parent=1 // pred_fallthru
      _
    // Predicated region
    $region38: #{tpu_custom_call.1} parent=1 // pred_check
      _
    $region39: #{tpu_custom_call.1} parent=1 // pred_check_branch
      %252 = sbr.rel (0) target = $region41
    $region40: #{tpu_custom_call.1} parent=1 // pred_region
      %253 = dma.done [#allocation4], 128
    $region41: #{tpu_custom_call.1} parent=1 // pred_fallthru
      _
    %254 = vsyncpa [#allocation3], 1
    %255 = vsyncpa [#allocation6], 1
    %256 = vsyncpa [#allocation4], 1

</llo_original>
